<compile_context>
chip_gen: v7x
topology: tpu7x:2x2x1
jax: 0.10.0
libtpu: 0.0.40
codegen_flags: <defaults>
</compile_context>

<pallas_src>
import functools

import jax
import jax.numpy as jnp
from jax.experimental import pallas as pl
from jax.experimental.pallas import tpu as pltpu

IN_FEATURES = 3
HIDDEN = 100
OUT_FEATURES = 1

IN_PAD = 8        # pad input-feature (sublane) axis up to sublane granularity
HIDDEN_PAD = 128  # pad hidden axis to one full sublane tile group


def mlp_kernel(x_ref, w1_ref, b1_ref, w2_ref, b2_ref, o_ref):
    # x_ref : (IN_PAD, TB)        batch on lanes (only rows 0..2 are real)
    # w1_ref: (HIDDEN_PAD, IN_PAD)
    # b1_ref: (HIDDEN_PAD, 1)
    # w2_ref: (HIDDEN_PAD, 1)
    # b2_ref: (1, 1)
    # o_ref : (1, TB)
    x = x_ref[...]
    w1 = w1_ref[...]

    # Layer 1 (Linear 3->100) as 3 broadcast multiply-adds on the VPU:
    # outer-product accumulation  h[j, b] = sum_k W1[j, k] * x[k, b].
    acc = w1[:, 0:1] * x[0:1, :]
    for k in range(1, IN_FEATURES):
        acc = acc + w1[:, k:k + 1] * x[k:k + 1, :]

    # Bias + ReLU, all in f32 (hidden activations never touch HBM).
    h = jnp.maximum(acc + b1_ref[...], 0.0)               # (HIDDEN_PAD, TB)

    # Layer 2 (Linear 100->1) as elementwise mul + sublane reduction (XLU),
    # avoiding an N=1 MXU matmul. Padded hidden rows are identically zero so
    # they contribute nothing.
    y = jnp.sum(w2_ref[...] * h, axis=0, keepdims=True) + b2_ref[...]  # (1, TB)

    o_ref[...] = y.astype(o_ref.dtype)


@functools.partial(jax.jit, static_argnames=("block_b",))
def test_model_forward(x, w1, b1, w2, b2, *, block_b=1024):
    """x: (B, 3) f32; w1: (3,100); b1: (100,); w2: (100,1); b2: (1,).

    Returns (B, 1) f32, matching TestModel.forward.
    For tiny B the fixed pallas_call overhead dominates; this kernel pays off
    once B is large (tens of thousands of rows).
    """
    B = x.shape[0]

    # Batch tile: multiple of 128 lanes, capped at block_b; pad B up to it.
    tb = min(block_b, pl.cdiv(B, 128) * 128)
    b_pad = pl.cdiv(B, tb) * tb

    # Lane-dense transposed input, zero-padded to (IN_PAD, b_pad).
    x_t = jnp.zeros((IN_PAD, b_pad), jnp.float32)
    x_t = x_t.at[:IN_FEATURES, :B].set(x.astype(jnp.float32).T)

    # Weights with the hidden axis on sublanes, zero-padded 100 -> 128.
    w1_t = jnp.zeros((HIDDEN_PAD, IN_PAD), jnp.float32)
    w1_t = w1_t.at[:HIDDEN, :IN_FEATURES].set(w1.astype(jnp.float32).T)
    b1_t = jnp.zeros((HIDDEN_PAD, 1), jnp.float32).at[:HIDDEN, 0].set(
        b1.astype(jnp.float32))
    w2_t = jnp.zeros((HIDDEN_PAD, 1), jnp.float32).at[:HIDDEN, :].set(
        w2.astype(jnp.float32))
    b2_t = b2.reshape(1, OUT_FEATURES).astype(jnp.float32)

    grid = (b_pad // tb,)
    out_t = pl.pallas_call(
        mlp_kernel,
        out_shape=jax.ShapeDtypeStruct((1, b_pad), jnp.float32),
        grid=grid,
        in_specs=[
            # streamed, double-buffered batch tiles
            pl.BlockSpec((IN_PAD, tb), lambda i: (0, i)),
            # weights / biases: VMEM-resident across the whole grid
            pl.BlockSpec((HIDDEN_PAD, IN_PAD), lambda i: (0, 0)),
            pl.BlockSpec((HIDDEN_PAD, 1), lambda i: (0, 0)),
            pl.BlockSpec((HIDDEN_PAD, 1), lambda i: (0, 0)),
            pl.BlockSpec((1, 1), lambda i: (0, 0)),
        ],
        out_specs=pl.BlockSpec((1, tb), lambda i: (0, i)),
        compiler_params=pltpu.CompilerParams(
            dimension_semantics=("parallel",)),
    )(x_t, w1_t, b1_t, w2_t, b2_t)

    # Back to the PyTorch-facing (B, 1) layout; drop batch padding.
    return out_t[:, :B].T


def init_params(key):
    """Deterministic init mimicking torch.nn.Linear default (uniform +/- 1/sqrt(fan_in))."""
    k1, k2, k3, k4 = jax.random.split(key, 4)
    bound1 = 1.0 / jnp.sqrt(jnp.float32(IN_FEATURES))
    bound2 = 1.0 / jnp.sqrt(jnp.float32(HIDDEN))
    # Stored already transposed relative to PyTorch: (in_features, out_features).
    w1 = jax.random.uniform(k1, (IN_FEATURES, HIDDEN), jnp.float32, -bound1, bound1)
    b1 = jax.random.uniform(k2, (HIDDEN,), jnp.float32, -bound1, bound1)
    w2 = jax.random.uniform(k3, (HIDDEN, OUT_FEATURES), jnp.float32, -bound2, bound2)
    b2 = jax.random.uniform(k4, (OUT_FEATURES,), jnp.float32, -bound2, bound2)
    return w1, b1, w2, b2


if __name__ == "__main__":
    key = jax.random.PRNGKey(0)
    k_x, k_p = jax.random.split(key)

    B = 8
    x = jax.random.normal(k_x, (B, IN_FEATURES), jnp.float32)
    w1, b1, w2, b2 = init_params(k_p)

    out = test_model_forward(x, w1, b1, w2, b2)
    out = jax.block_until_ready(out)

    # Reference check in plain JAX.
    ref = jnp.maximum(x @ w1 + b1, 0.0) @ w2 + b2
    assert out.shape == (B, OUT_FEATURES)
    assert jnp.allclose(out, ref, atol=1e-5, rtol=1e-5)

    print("KERNEL_OK")
</pallas_src>

<mosaic_0001>
module attributes {stable_mosaic.version = 11 : i64} {
  func.func @mlp_kernel(%arg0: i32, %arg1: memref<8x128xf32, #tpu.memory_space<vmem>>, %arg2: memref<128x8xf32, #tpu.memory_space<vmem>>, %arg3: memref<128x1xf32, #tpu.memory_space<vmem>>, %arg4: memref<128x1xf32, #tpu.memory_space<vmem>>, %arg5: memref<1x1xf32, #tpu.memory_space<vmem>>, %arg6: memref<1x128xf32, #tpu.memory_space<vmem>>) attributes {dimension_semantics = [#tpu.dimension_semantics<parallel>], iteration_bounds = array<i64: 1>, scalar_prefetch = 0 : i64, scratch_operands = 0 : i64, tpu.core_type = #tpu.core_type<tc>, window_params = [{transform_indices = @transform_0, window_bounds = array<i64: 8, 128>}, {pipeline_mode = #tpu.pipeline_mode<synchronous>, transform_indices = @transform_1, window_bounds = array<i64: 128, 8>}, {pipeline_mode = #tpu.pipeline_mode<synchronous>, transform_indices = @transform_2, window_bounds = array<i64: 128, 1>}, {pipeline_mode = #tpu.pipeline_mode<synchronous>, transform_indices = @transform_3, window_bounds = array<i64: 128, 1>}, {pipeline_mode = #tpu.pipeline_mode<synchronous>, transform_indices = @transform_4, window_bounds = array<i64: 1, 1>}, {transform_indices = @transform_5, window_bounds = array<i64: 1, 128>}]} {
    %c0 = arith.constant 0 : index
    %c0_0 = arith.constant 0 : index
    %0 = vector.load %arg1[%c0, %c0_0] : memref<8x128xf32, #tpu.memory_space<vmem>>, vector<8x128xf32>
    %c0_1 = arith.constant 0 : index
    %c0_2 = arith.constant 0 : index
    %1 = vector.load %arg2[%c0_1, %c0_2] : memref<128x8xf32, #tpu.memory_space<vmem>>, vector<128x8xf32>
    %2 = vector.extract_strided_slice %1 {offsets = [0, 0], sizes = [128, 1], strides = [1, 1]} : vector<128x8xf32> to vector<128x1xf32>
    %3 = vector.extract_strided_slice %0 {offsets = [0, 0], sizes = [1, 128], strides = [1, 1]} : vector<8x128xf32> to vector<1x128xf32>
    %4 = vector.broadcast %2 : vector<128x1xf32> to vector<128x128xf32>
    %5 = vector.broadcast %3 : vector<1x128xf32> to vector<128x128xf32>
    %6 = arith.mulf %4, %5 : vector<128x128xf32>
    %7 = vector.extract_strided_slice %1 {offsets = [0, 1], sizes = [128, 1], strides = [1, 1]} : vector<128x8xf32> to vector<128x1xf32>
    %8 = vector.extract_strided_slice %0 {offsets = [1, 0], sizes = [1, 128], strides = [1, 1]} : vector<8x128xf32> to vector<1x128xf32>
    %9 = vector.broadcast %7 : vector<128x1xf32> to vector<128x128xf32>
    %10 = vector.broadcast %8 : vector<1x128xf32> to vector<128x128xf32>
    %11 = arith.mulf %9, %10 : vector<128x128xf32>
    %12 = arith.addf %6, %11 : vector<128x128xf32>
    %13 = vector.extract_strided_slice %1 {offsets = [0, 2], sizes = [128, 1], strides = [1, 1]} : vector<128x8xf32> to vector<128x1xf32>
    %14 = vector.extract_strided_slice %0 {offsets = [2, 0], sizes = [1, 128], strides = [1, 1]} : vector<8x128xf32> to vector<1x128xf32>
    %15 = vector.broadcast %13 : vector<128x1xf32> to vector<128x128xf32>
    %16 = vector.broadcast %14 : vector<1x128xf32> to vector<128x128xf32>
    %17 = arith.mulf %15, %16 : vector<128x128xf32>
    %18 = arith.addf %12, %17 : vector<128x128xf32>
    %c0_3 = arith.constant 0 : index
    %c0_4 = arith.constant 0 : index
    %19 = vector.load %arg3[%c0_3, %c0_4] : memref<128x1xf32, #tpu.memory_space<vmem>>, vector<128x1xf32>
    %20 = vector.broadcast %19 : vector<128x1xf32> to vector<128x128xf32>
    %21 = arith.addf %18, %20 : vector<128x128xf32>
    %cst = arith.constant 0.000000e+00 : f32
    %22 = vector.broadcast %cst : f32 to vector<128x128xf32>
    %23 = arith.maximumf %21, %22 : vector<128x128xf32>
    %c0_5 = arith.constant 0 : index
    %c0_6 = arith.constant 0 : index
    %24 = vector.load %arg4[%c0_5, %c0_6] : memref<128x1xf32, #tpu.memory_space<vmem>>, vector<128x1xf32>
    %25 = vector.broadcast %24 : vector<128x1xf32> to vector<128x128xf32>
    %26 = arith.mulf %25, %23 : vector<128x128xf32>
    %cst_7 = arith.constant dense<0.000000e+00> : vector<128xf32>
    %27 = vector.multi_reduction <add>, %26, %cst_7 [0] : vector<128x128xf32> to vector<128xf32>
    %28 = vector.shape_cast %27 : vector<128xf32> to vector<1x128xf32>
    %c0_8 = arith.constant 0 : index
    %c0_9 = arith.constant 0 : index
    %29 = vector.load %arg5[%c0_8, %c0_9] : memref<1x1xf32, #tpu.memory_space<vmem>>, vector<1x1xf32>
    %30 = vector.broadcast %29 : vector<1x1xf32> to vector<1x128xf32>
    %31 = arith.addf %28, %30 : vector<1x128xf32>
    %c0_10 = arith.constant 0 : index
    %c0_11 = arith.constant 0 : index
    %32 = vector.load %arg6[%c0_10, %c0_11] : memref<1x128xf32, #tpu.memory_space<vmem>>, vector<1x128xf32>
    tpu.vector_store %arg6[%c0_10, %c0_11], %31 {strides = array<i32>} : memref<1x128xf32, #tpu.memory_space<vmem>>, vector<1x128xf32>,
    return
  }
  func.func @transform_0(%arg0: i32) -> (i32, i32) {
    %c0_i32 = arith.constant 0 : i32
    %c0_i32_0 = arith.constant 0 : i32
    return %c0_i32, %arg0 : i32, i32
  }
  func.func @transform_1(%arg0: i32) -> (i32, i32) {
    %c0_i32 = arith.constant 0 : i32
    %c0_i32_0 = arith.constant 0 : i32
    %c0_i32_1 = arith.constant 0 : i32
    return %c0_i32, %c0_i32_0 : i32, i32
  }
  func.func @transform_2(%arg0: i32) -> (i32, i32) {
    %c0_i32 = arith.constant 0 : i32
    %c0_i32_0 = arith.constant 0 : i32
    %c0_i32_1 = arith.constant 0 : i32
    return %c0_i32, %c0_i32_0 : i32, i32
  }
  func.func @transform_3(%arg0: i32) -> (i32, i32) {
    %c0_i32 = arith.constant 0 : i32
    %c0_i32_0 = arith.constant 0 : i32
    %c0_i32_1 = arith.constant 0 : i32
    return %c0_i32, %c0_i32_0 : i32, i32
  }
  func.func @transform_4(%arg0: i32) -> (i32, i32) {
    %c0_i32 = arith.constant 0 : i32
    %c0_i32_0 = arith.constant 0 : i32
    %c0_i32_1 = arith.constant 0 : i32
    return %c0_i32, %c0_i32_0 : i32, i32
  }
  func.func @transform_5(%arg0: i32) -> (i32, i32) {
    %c0_i32 = arith.constant 0 : i32
    %c0_i32_0 = arith.constant 0 : i32
    return %c0_i32, %arg0 : i32, i32
  }
}

</mosaic_0001>

<llo_original>
// kernel: test_model_forward.1
$region0: #{test_model_forward.1}
  #allocation0 [shape = 'u32[]', space=smem, size = 0x4, offset = 0x4, fixed_abs, tag = 'smem constant byte address 0x4 - core index']
  #allocation1 [shape = 'u32[144,128]{1,0:T(1,128)}', space=vmem, size = 0x12000, scoped, tag = 'internal scratch']
  #allocation2 [shape = 'f32[1,1]{1,0:T(1,128)S(1)}', space=vmem, size = 0x200, scoped, tag = 'scoped memory for test_model_forward.1']
  %s0 = inlined_call_operand.vmem [shape: f32[8,128], index: 0, kind: input, shape index: {}]
  %s1 = inlined_call_operand.vmem [shape: f32[128,8], index: 1, kind: input, shape index: {}]
  %s2 = inlined_call_operand.vmem [shape: f32[128,1], index: 2, kind: input, shape index: {}]
  %s3 = inlined_call_operand.vmem [shape: f32[128,1], index: 3, kind: input, shape index: {}]
  %s4 = inlined_call_operand.<no memory space> [shape: f32[1,1], index: 4, kind: input, shape index: {}]
  %s5 = inlined_call_operand.vmem [shape: f32[1,128], index: 5, kind: output, shape index: {}]
  %s6 = sld [smem:[#allocation0]]
  $region30: #{test_model_forward.1} parent=0
    _
  %s8 = ssub.s32 1, %s6
  %s9 = scalar_select 0, %s8, %s6
  %v10 = vstv %s4
  %11 = vst [vmem:[#allocation2] sm:$0x1] %v10
  // Predicated region
  $region2: #{test_model_forward.1} parent=0 // pred_check
    _
  $region3: #{test_model_forward.1} parent=0 // pred_check_branch
    %13 = sbr.rel (0) target = $region5
  $region4: #{test_model_forward.1} parent=0 // pred_region
    _
  $region5: #{test_model_forward.1} parent=0 // pred_fallthru
    _
  // Predicated region
  $region6: #{test_model_forward.1} parent=0 // pred_check
    _
  $region7: #{test_model_forward.1} parent=0 // pred_check_branch
    %15 = sbr.rel (0) target = $region9
  $region8: #{test_model_forward.1} parent=0 // pred_region
    _
  $region9: #{test_model_forward.1} parent=0 // pred_fallthru
    _
  // Predicated region
  $region10: #{test_model_forward.1} parent=0 // pred_check
    _
  $region11: #{test_model_forward.1} parent=0 // pred_check_branch
    %17 = sbr.rel (0) target = $region13
  $region12: #{test_model_forward.1} parent=0 // pred_region
    _
  $region13: #{test_model_forward.1} parent=0 // pred_fallthru
    _
  // Predicated region
  $region14: #{test_model_forward.1} parent=0 // pred_check
    _
  $region15: #{test_model_forward.1} parent=0 // pred_check_branch
    %19 = sbr.rel (0) target = $region17
  $region16: #{test_model_forward.1} parent=0 // pred_region
    _
  $region17: #{test_model_forward.1} parent=0 // pred_fallthru
    _
  // Predicated region
  $region18: #{test_model_forward.1} parent=0 // pred_check
    _
  $region19: #{test_model_forward.1} parent=0 // pred_check_branch
    %21 = sbr.rel (0) target = $region21
  $region20: #{test_model_forward.1} parent=0 // pred_region
    _
  $region21: #{test_model_forward.1} parent=0 // pred_fallthru
    _
  %v22 = vld [vmem:[%s0] sm:$0xff]
  %v23 = vld [vmem:[%s1] sm:$0xff]
  %v24 = vld [vmem:[%s1 + $0x8] sm:$0xff]
  %v25 = vld [vmem:[%s1 + $0x10] sm:$0xff]
  %v26 = vld [vmem:[%s1 + $0x18] sm:$0xff]
  %v27 = vld [vmem:[%s1 + $0x20] sm:$0xff]
  %v28 = vld [vmem:[%s1 + $0x28] sm:$0xff]
  %v29 = vld [vmem:[%s1 + $0x30] sm:$0xff]
  %v30 = vld [vmem:[%s1 + $0x38] sm:$0xff]
  %v31 = vld [vmem:[%s1 + $0x40] sm:$0xff]
  %v32 = vld [vmem:[%s1 + $0x48] sm:$0xff]
  %v33 = vld [vmem:[%s1 + $0x50] sm:$0xff]
  %v34 = vld [vmem:[%s1 + $0x58] sm:$0xff]
  %v35 = vld [vmem:[%s1 + $0x60] sm:$0xff]
  %v36 = vld [vmem:[%s1 + $0x68] sm:$0xff]
  %v37 = vld [vmem:[%s1 + $0x70] sm:$0xff]
  %v38 = vld [vmem:[%s1 + $0x78] sm:$0xff]
  %40 = vset.pattern.permute.xlu0 0
  %41 = vperm.xlu0 %40, %v23
  %v42 = vpop.permute.xlu0 %41
  %45 = vset.pattern.permute.xlu0 0
  %46 = vperm.xlu0 %45, %v24
  %v47 = vpop.permute.xlu0 %46
  %50 = vset.pattern.permute.xlu0 0
  %51 = vperm.xlu0 %50, %v25
  %v52 = vpop.permute.xlu0 %51
  %55 = vset.pattern.permute.xlu0 0
  %56 = vperm.xlu0 %55, %v26
  %v57 = vpop.permute.xlu0 %56
  %60 = vset.pattern.permute.xlu0 0
  %61 = vperm.xlu0 %60, %v27
  %v62 = vpop.permute.xlu0 %61
  %65 = vset.pattern.permute.xlu0 0
  %66 = vperm.xlu0 %65, %v28
  %v67 = vpop.permute.xlu0 %66
  %70 = vset.pattern.permute.xlu0 0
  %71 = vperm.xlu0 %70, %v29
  %v72 = vpop.permute.xlu0 %71
  %75 = vset.pattern.permute.xlu0 0
  %76 = vperm.xlu0 %75, %v30
  %v77 = vpop.permute.xlu0 %76
  %80 = vset.pattern.permute.xlu0 0
  %81 = vperm.xlu0 %80, %v31
  %v82 = vpop.permute.xlu0 %81
  %85 = vset.pattern.permute.xlu0 0
  %86 = vperm.xlu0 %85, %v32
  %v87 = vpop.permute.xlu0 %86
  %90 = vset.pattern.permute.xlu0 0
  %91 = vperm.xlu0 %90, %v33
  %v92 = vpop.permute.xlu0 %91
  %95 = vset.pattern.permute.xlu0 0
  %96 = vperm.xlu0 %95, %v34
  %v97 = vpop.permute.xlu0 %96
  %100 = vset.pattern.permute.xlu0 0
  %101 = vperm.xlu0 %100, %v35
  %v102 = vpop.permute.xlu0 %101
  %105 = vset.pattern.permute.xlu0 0
  %106 = vperm.xlu0 %105, %v36
  %v107 = vpop.permute.xlu0 %106
  %110 = vset.pattern.permute.xlu0 0
  %111 = vperm.xlu0 %110, %v37
  %v112 = vpop.permute.xlu0 %111
  %115 = vset.pattern.permute.xlu0 0
  %116 = vperm.xlu0 %115, %v38
  %v117 = vpop.permute.xlu0 %116
  %v119 = vlaneseq
  %v120 = vshrl.u32 %v119, 7
  %v121 = vsub.s32 0, %v120
  %v122 = vrot.slane %v22, %v121
  %v123 = vmul.f32 %v42, %v122
  %v124 = vmul.f32 %v47, %v122
  %v125 = vmul.f32 %v52, %v122
  %v126 = vmul.f32 %v57, %v122
  %v127 = vmul.f32 %v62, %v122
  %v128 = vmul.f32 %v67, %v122
  %v129 = vmul.f32 %v72, %v122
  %v130 = vmul.f32 %v77, %v122
  %v131 = vmul.f32 %v82, %v122
  %v132 = vmul.f32 %v87, %v122
  %v133 = vmul.f32 %v92, %v122
  %v134 = vmul.f32 %v97, %v122
  %v135 = vmul.f32 %v102, %v122
  %v136 = vmul.f32 %v107, %v122
  %v137 = vmul.f32 %v112, %v122
  %v138 = vmul.f32 %v117, %v122
  %139 = vset.pattern.permute.xlu0 1
  %140 = vperm.xlu0 %139, %v23
  %v141 = vpop.permute.xlu0 %140
  %143 = vset.pattern.permute.xlu0 1
  %144 = vperm.xlu0 %143, %v24
  %v145 = vpop.permute.xlu0 %144
  %147 = vset.pattern.permute.xlu0 1
  %148 = vperm.xlu0 %147, %v25
  %v149 = vpop.permute.xlu0 %148
  %151 = vset.pattern.permute.xlu0 1
  %152 = vperm.xlu0 %151, %v26
  %v153 = vpop.permute.xlu0 %152
  %155 = vset.pattern.permute.xlu0 1
  %156 = vperm.xlu0 %155, %v27
  %v157 = vpop.permute.xlu0 %156
  %159 = vset.pattern.permute.xlu0 1
  %160 = vperm.xlu0 %159, %v28
  %v161 = vpop.permute.xlu0 %160
  %163 = vset.pattern.permute.xlu0 1
  %164 = vperm.xlu0 %163, %v29
  %v165 = vpop.permute.xlu0 %164
  %167 = vset.pattern.permute.xlu0 1
  %168 = vperm.xlu0 %167, %v30
  %v169 = vpop.permute.xlu0 %168
  %171 = vset.pattern.permute.xlu0 1
  %172 = vperm.xlu0 %171, %v31
  %v173 = vpop.permute.xlu0 %172
  %175 = vset.pattern.permute.xlu0 1
  %176 = vperm.xlu0 %175, %v32
  %v177 = vpop.permute.xlu0 %176
  %179 = vset.pattern.permute.xlu0 1
  %180 = vperm.xlu0 %179, %v33
  %v181 = vpop.permute.xlu0 %180
  %183 = vset.pattern.permute.xlu0 1
  %184 = vperm.xlu0 %183, %v34
  %v185 = vpop.permute.xlu0 %184
  %187 = vset.pattern.permute.xlu0 1
  %188 = vperm.xlu0 %187, %v35
  %v189 = vpop.permute.xlu0 %188
  %191 = vset.pattern.permute.xlu0 1
  %192 = vperm.xlu0 %191, %v36
  %v193 = vpop.permute.xlu0 %192
  %195 = vset.pattern.permute.xlu0 1
  %196 = vperm.xlu0 %195, %v37
  %v197 = vpop.permute.xlu0 %196
  %199 = vset.pattern.permute.xlu0 1
  %200 = vperm.xlu0 %199, %v38
  %v201 = vpop.permute.xlu0 %200
  %v203 = vlaneseq
  %v204 = vshrl.u32 %v203, 7
  %v205 = vsub.s32 1, %v204
  %v206 = vrot.slane %v22, %v205
  %v207 = vmul.f32 %v141, %v206
  %v208 = vmul.f32 %v145, %v206
  %v209 = vmul.f32 %v149, %v206
  %v210 = vmul.f32 %v153, %v206
  %v211 = vmul.f32 %v157, %v206
  %v212 = vmul.f32 %v161, %v206
  %v213 = vmul.f32 %v165, %v206
  %v214 = vmul.f32 %v169, %v206
  %v215 = vmul.f32 %v173, %v206
  %v216 = vmul.f32 %v177, %v206
  %v217 = vmul.f32 %v181, %v206
  %v218 = vmul.f32 %v185, %v206
  %v219 = vmul.f32 %v189, %v206
  %v220 = vmul.f32 %v193, %v206
  %v221 = vmul.f32 %v197, %v206
  %v222 = vmul.f32 %v201, %v206
  %v223 = vadd.f32 %v123, %v207
  %v224 = vadd.f32 %v124, %v208
  %v225 = vadd.f32 %v125, %v209
  %v226 = vadd.f32 %v126, %v210
  %v227 = vadd.f32 %v127, %v211
  %v228 = vadd.f32 %v128, %v212
  %v229 = vadd.f32 %v129, %v213
  %v230 = vadd.f32 %v130, %v214
  %v231 = vadd.f32 %v131, %v215
  %v232 = vadd.f32 %v132, %v216
  %v233 = vadd.f32 %v133, %v217
  %v234 = vadd.f32 %v134, %v218
  %v235 = vadd.f32 %v135, %v219
  %v236 = vadd.f32 %v136, %v220
  %v237 = vadd.f32 %v137, %v221
  %v238 = vadd.f32 %v138, %v222
  %239 = vset.pattern.permute.xlu0 2
  %240 = vperm.xlu0 %239, %v23
  %v241 = vpop.permute.xlu0 %240
  %243 = vset.pattern.permute.xlu0 2
  %244 = vperm.xlu0 %243, %v24
  %v245 = vpop.permute.xlu0 %244
  %247 = vset.pattern.permute.xlu0 2
  %248 = vperm.xlu0 %247, %v25
  %v249 = vpop.permute.xlu0 %248
  %251 = vset.pattern.permute.xlu0 2
  %252 = vperm.xlu0 %251, %v26
  %v253 = vpop.permute.xlu0 %252
  %255 = vset.pattern.permute.xlu0 2
  %256 = vperm.xlu0 %255, %v27
  %v257 = vpop.permute.xlu0 %256
  %259 = vset.pattern.permute.xlu0 2
  %260 = vperm.xlu0 %259, %v28
  %v261 = vpop.permute.xlu0 %260
  %263 = vset.pattern.permute.xlu0 2
  %264 = vperm.xlu0 %263, %v29
  %v265 = vpop.permute.xlu0 %264
  %267 = vset.pattern.permute.xlu0 2
  %268 = vperm.xlu0 %267, %v30
  %v269 = vpop.permute.xlu0 %268
  %271 = vset.pattern.permute.xlu0 2
  %272 = vperm.xlu0 %271, %v31
  %v273 = vpop.permute.xlu0 %272
  %275 = vset.pattern.permute.xlu0 2
  %276 = vperm.xlu0 %275, %v32
  %v277 = vpop.permute.xlu0 %276
  %279 = vset.pattern.permute.xlu0 2
  %280 = vperm.xlu0 %279, %v33
  %v281 = vpop.permute.xlu0 %280
  %283 = vset.pattern.permute.xlu0 2
  %284 = vperm.xlu0 %283, %v34
  %v285 = vpop.permute.xlu0 %284
  %287 = vset.pattern.permute.xlu0 2
  %288 = vperm.xlu0 %287, %v35
  %v289 = vpop.permute.xlu0 %288
  %291 = vset.pattern.permute.xlu0 2
  %292 = vperm.xlu0 %291, %v36
  %v293 = vpop.permute.xlu0 %292
  %295 = vset.pattern.permute.xlu0 2
  %296 = vperm.xlu0 %295, %v37
  %v297 = vpop.permute.xlu0 %296
  %299 = vset.pattern.permute.xlu0 2
  %300 = vperm.xlu0 %299, %v38
  %v301 = vpop.permute.xlu0 %300
  %v303 = vlaneseq
  %v304 = vshrl.u32 %v303, 7
  %v305 = vsub.s32 2, %v304
  %v306 = vrot.slane %v22, %v305
  %v307 = vmul.f32 %v241, %v306
  %v308 = vmul.f32 %v245, %v306
  %v309 = vmul.f32 %v249, %v306
  %v310 = vmul.f32 %v253, %v306
  %v311 = vmul.f32 %v257, %v306
  %v312 = vmul.f32 %v261, %v306
  %v313 = vmul.f32 %v265, %v306
  %v314 = vmul.f32 %v269, %v306
  %v315 = vmul.f32 %v273, %v306
  %v316 = vmul.f32 %v277, %v306
  %v317 = vmul.f32 %v281, %v306
  %v318 = vmul.f32 %v285, %v306
  %v319 = vmul.f32 %v289, %v306
  %v320 = vmul.f32 %v293, %v306
  %v321 = vmul.f32 %v297, %v306
  %v322 = vmul.f32 %v301, %v306
  %v323 = vadd.f32 %v223, %v307
  %v324 = vadd.f32 %v224, %v308
  %v325 = vadd.f32 %v225, %v309
  %v326 = vadd.f32 %v226, %v310
  %v327 = vadd.f32 %v227, %v311
  %v328 = vadd.f32 %v228, %v312
  %v329 = vadd.f32 %v229, %v313
  %v330 = vadd.f32 %v230, %v314
  %v331 = vadd.f32 %v231, %v315
  %v332 = vadd.f32 %v232, %v316
  %v333 = vadd.f32 %v233, %v317
  %v334 = vadd.f32 %v234, %v318
  %v335 = vadd.f32 %v235, %v319
  %v336 = vadd.f32 %v236, %v320
  %v337 = vadd.f32 %v237, %v321
  %v338 = vadd.f32 %v238, %v322
  %v339 = vld [vmem:[%s2] sm:$0xff]
  %v340 = vld [vmem:[%s2 + $0x8] sm:$0xff]
  %v341 = vld [vmem:[%s2 + $0x10] sm:$0xff]
  %v342 = vld [vmem:[%s2 + $0x18] sm:$0xff]
  %v343 = vld [vmem:[%s2 + $0x20] sm:$0xff]
  %v344 = vld [vmem:[%s2 + $0x28] sm:$0xff]
  %v345 = vld [vmem:[%s2 + $0x30] sm:$0xff]
  %v346 = vld [vmem:[%s2 + $0x38] sm:$0xff]
  %v347 = vld [vmem:[%s2 + $0x40] sm:$0xff]
  %v348 = vld [vmem:[%s2 + $0x48] sm:$0xff]
  %v349 = vld [vmem:[%s2 + $0x50] sm:$0xff]
  %v350 = vld [vmem:[%s2 + $0x58] sm:$0xff]
  %v351 = vld [vmem:[%s2 + $0x60] sm:$0xff]
  %v352 = vld [vmem:[%s2 + $0x68] sm:$0xff]
  %v353 = vld [vmem:[%s2 + $0x70] sm:$0xff]
  %v354 = vld [vmem:[%s2 + $0x78] sm:$0xff]
  %356 = vset.pattern.permute.xlu0 0
  %357 = vperm.xlu0 %356, %v339
  %v358 = vpop.permute.xlu0 %357
  %361 = vset.pattern.permute.xlu0 0
  %362 = vperm.xlu0 %361, %v340
  %v363 = vpop.permute.xlu0 %362
  %366 = vset.pattern.permute.xlu0 0
  %367 = vperm.xlu0 %366, %v341
  %v368 = vpop.permute.xlu0 %367
  %371 = vset.pattern.permute.xlu0 0
  %372 = vperm.xlu0 %371, %v342
  %v373 = vpop.permute.xlu0 %372
  %376 = vset.pattern.permute.xlu0 0
  %377 = vperm.xlu0 %376, %v343
  %v378 = vpop.permute.xlu0 %377
  %381 = vset.pattern.permute.xlu0 0
  %382 = vperm.xlu0 %381, %v344
  %v383 = vpop.permute.xlu0 %382
  %386 = vset.pattern.permute.xlu0 0
  %387 = vperm.xlu0 %386, %v345
  %v388 = vpop.permute.xlu0 %387
  %391 = vset.pattern.permute.xlu0 0
  %392 = vperm.xlu0 %391, %v346
  %v393 = vpop.permute.xlu0 %392
  %396 = vset.pattern.permute.xlu0 0
  %397 = vperm.xlu0 %396, %v347
  %v398 = vpop.permute.xlu0 %397
  %401 = vset.pattern.permute.xlu0 0
  %402 = vperm.xlu0 %401, %v348
  %v403 = vpop.permute.xlu0 %402
  %406 = vset.pattern.permute.xlu0 0
  %407 = vperm.xlu0 %406, %v349
  %v408 = vpop.permute.xlu0 %407
  %411 = vset.pattern.permute.xlu0 0
  %412 = vperm.xlu0 %411, %v350
  %v413 = vpop.permute.xlu0 %412
  %416 = vset.pattern.permute.xlu0 0
  %417 = vperm.xlu0 %416, %v351
  %v418 = vpop.permute.xlu0 %417
  %421 = vset.pattern.permute.xlu0 0
  %422 = vperm.xlu0 %421, %v352
  %v423 = vpop.permute.xlu0 %422
  %426 = vset.pattern.permute.xlu0 0
  %427 = vperm.xlu0 %426, %v353
  %v428 = vpop.permute.xlu0 %427
  %431 = vset.pattern.permute.xlu0 0
  %432 = vperm.xlu0 %431, %v354
  %v433 = vpop.permute.xlu0 %432
  %v435 = vadd.f32 %v323, %v358
  %v436 = vadd.f32 %v324, %v363
  %v437 = vadd.f32 %v325, %v368
  %v438 = vadd.f32 %v326, %v373
  %v439 = vadd.f32 %v327, %v378
  %v440 = vadd.f32 %v328, %v383
  %v441 = vadd.f32 %v329, %v388
  %v442 = vadd.f32 %v330, %v393
  %v443 = vadd.f32 %v331, %v398
  %v444 = vadd.f32 %v332, %v403
  %v445 = vadd.f32 %v333, %v408
  %v446 = vadd.f32 %v334, %v413
  %v447 = vadd.f32 %v335, %v418
  %v448 = vadd.f32 %v336, %v423
  %v449 = vadd.f32 %v337, %v428
  %v450 = vadd.f32 %v338, %v433
  %v451 = vmax.f32 %v435, 0.0
  %v452 = vmax.f32 %v436, 0.0
  %v453 = vmax.f32 %v437, 0.0
  %v454 = vmax.f32 %v438, 0.0
  %v455 = vmax.f32 %v439, 0.0
  %v456 = vmax.f32 %v440, 0.0
  %v457 = vmax.f32 %v441, 0.0
  %v458 = vmax.f32 %v442, 0.0
  %v459 = vmax.f32 %v443, 0.0
  %v460 = vmax.f32 %v444, 0.0
  %v461 = vmax.f32 %v445, 0.0
  %v462 = vmax.f32 %v446, 0.0
  %v463 = vmax.f32 %v447, 0.0
  %v464 = vmax.f32 %v448, 0.0
  %v465 = vmax.f32 %v449, 0.0
  %v466 = vmax.f32 %v450, 0.0
  %v467 = vld [vmem:[%s3] sm:$0xff]
  %v468 = vld [vmem:[%s3 + $0x8] sm:$0xff]
  %v469 = vld [vmem:[%s3 + $0x10] sm:$0xff]
  %v470 = vld [vmem:[%s3 + $0x18] sm:$0xff]
  %v471 = vld [vmem:[%s3 + $0x20] sm:$0xff]
  %v472 = vld [vmem:[%s3 + $0x28] sm:$0xff]
  %v473 = vld [vmem:[%s3 + $0x30] sm:$0xff]
  %v474 = vld [vmem:[%s3 + $0x38] sm:$0xff]
  %v475 = vld [vmem:[%s3 + $0x40] sm:$0xff]
  %v476 = vld [vmem:[%s3 + $0x48] sm:$0xff]
  %v477 = vld [vmem:[%s3 + $0x50] sm:$0xff]
  %v478 = vld [vmem:[%s3 + $0x58] sm:$0xff]
  %v479 = vld [vmem:[%s3 + $0x60] sm:$0xff]
  %v480 = vld [vmem:[%s3 + $0x68] sm:$0xff]
  %v481 = vld [vmem:[%s3 + $0x70] sm:$0xff]
  %v482 = vld [vmem:[%s3 + $0x78] sm:$0xff]
  %484 = vset.pattern.permute.xlu0 0
  %485 = vperm.xlu0 %484, %v467
  %v486 = vpop.permute.xlu0 %485
  %489 = vset.pattern.permute.xlu0 0
  %490 = vperm.xlu0 %489, %v468
  %v491 = vpop.permute.xlu0 %490
  %494 = vset.pattern.permute.xlu0 0
  %495 = vperm.xlu0 %494, %v469
  %v496 = vpop.permute.xlu0 %495
  %499 = vset.pattern.permute.xlu0 0
  %500 = vperm.xlu0 %499, %v470
  %v501 = vpop.permute.xlu0 %500
  %504 = vset.pattern.permute.xlu0 0
  %505 = vperm.xlu0 %504, %v471
  %v506 = vpop.permute.xlu0 %505
  %509 = vset.pattern.permute.xlu0 0
  %510 = vperm.xlu0 %509, %v472
  %v511 = vpop.permute.xlu0 %510
  %514 = vset.pattern.permute.xlu0 0
  %515 = vperm.xlu0 %514, %v473
  %v516 = vpop.permute.xlu0 %515
  %519 = vset.pattern.permute.xlu0 0
  %520 = vperm.xlu0 %519, %v474
  %v521 = vpop.permute.xlu0 %520
  %524 = vset.pattern.permute.xlu0 0
  %525 = vperm.xlu0 %524, %v475
  %v526 = vpop.permute.xlu0 %525
  %529 = vset.pattern.permute.xlu0 0
  %530 = vperm.xlu0 %529, %v476
  %v531 = vpop.permute.xlu0 %530
  %534 = vset.pattern.permute.xlu0 0
  %535 = vperm.xlu0 %534, %v477
  %v536 = vpop.permute.xlu0 %535
  %539 = vset.pattern.permute.xlu0 0
  %540 = vperm.xlu0 %539, %v478
  %v541 = vpop.permute.xlu0 %540
  %544 = vset.pattern.permute.xlu0 0
  %545 = vperm.xlu0 %544, %v479
  %v546 = vpop.permute.xlu0 %545
  %549 = vset.pattern.permute.xlu0 0
  %550 = vperm.xlu0 %549, %v480
  %v551 = vpop.permute.xlu0 %550
  %554 = vset.pattern.permute.xlu0 0
  %555 = vperm.xlu0 %554, %v481
  %v556 = vpop.permute.xlu0 %555
  %559 = vset.pattern.permute.xlu0 0
  %560 = vperm.xlu0 %559, %v482
  %v561 = vpop.permute.xlu0 %560
  %v563 = vmul.f32 %v486, %v451
  %v564 = vmul.f32 %v491, %v452
  %v565 = vmul.f32 %v496, %v453
  %v566 = vmul.f32 %v501, %v454
  %v567 = vmul.f32 %v506, %v455
  %v568 = vmul.f32 %v511, %v456
  %v569 = vmul.f32 %v516, %v457
  %v570 = vmul.f32 %v521, %v458
  %v571 = vmul.f32 %v526, %v459
  %v572 = vmul.f32 %v531, %v460
  %v573 = vmul.f32 %v536, %v461
  %v574 = vmul.f32 %v541, %v462
  %v575 = vmul.f32 %v546, %v463
  %v576 = vmul.f32 %v551, %v464
  %v577 = vmul.f32 %v556, %v465
  %v578 = vmul.f32 %v561, %v466
  %v579 = vadd.f32 %v563, %v564
  %v580 = vadd.f32 %v579, %v565
  %v581 = vadd.f32 %v580, %v566
  %v582 = vadd.f32 %v581, %v567
  %v583 = vadd.f32 %v582, %v568
  %v584 = vadd.f32 %v583, %v569
  %v585 = vadd.f32 %v584, %v570
  %v586 = vadd.f32 %v585, %v571
  %v587 = vadd.f32 %v586, %v572
  %v588 = vadd.f32 %v587, %v573
  %v589 = vadd.f32 %v588, %v574
  %v590 = vadd.f32 %v589, %v575
  %v591 = vadd.f32 %v590, %v576
  %v592 = vadd.f32 %v591, %v577
  %v593 = vadd.f32 %v592, %v578
  %v594 = vrot.slane %v593, 4
  %v595 = vadd.f32 %v593, %v594
  %v596 = vrot.slane %v595, 2
  %v597 = vadd.f32 %v595, %v596
  %v598 = vrot.slane %v597, 1
  %v599 = vadd.f32 %v597, %v598
  %v600 = vld [vmem:[#allocation2] sm:$0x1]
  %602 = vset.pattern.permute.xlu0 0
  %603 = vperm.xlu0 %602, %v600
  %v604 = vpop.permute.xlu0 %603
  %v606 = vlaneseq
  %v607 = vshrl.u32 %v606, 7
  %v608 = vsub.s32 0, %v607
  %v609 = vrot.slane %v604, %v608
  %v610 = vadd.f32 %v599, %v609
  %611 = vst [vmem:[%s5] sm:$0x1] %v610
  // Predicated region
  $region22: #{test_model_forward.1} parent=0 // pred_check
    _
  $region23: #{test_model_forward.1} parent=0 // pred_check_branch
    %613 = sbr.rel (0) target = $region25
  $region24: #{test_model_forward.1} parent=0 // pred_region
    _
  $region25: #{test_model_forward.1} parent=0 // pred_fallthru
    _
  // Predicated region
  $region26: #{test_model_forward.1} parent=0 // pred_check
    _
  $region27: #{test_model_forward.1} parent=0 // pred_check_branch
    %615 = sbr.rel (0) target = $region29
  $region28: #{test_model_forward.1} parent=0 // pred_region
    _
  $region29: #{test_model_forward.1} parent=0 // pred_fallthru
    _

</llo_original>
